<compile_context>
chip_gen: v7x
topology: tpu7x:2x2x1
jax: 0.10.0
libtpu: 0.0.40
codegen_flags: <defaults>
</compile_context>

<pallas_src>
import math
import functools

import jax
import jax.numpy as jnp
from jax.experimental import pallas as pl
from jax.experimental.pallas import tpu as pltpu


# ---------------------------------------------------------------------------
# Plain-JAX glue: sinusoidal timestep embedding + SiLU + Linear projection.
# ---------------------------------------------------------------------------
def sinusoidal_pos_emb(t, num_steps, dim, rescale_steps=4000.0):
    """SinusoidalPosEmb.forward — matches the PyTorch module exactly."""
    t = t.astype(jnp.float32) / float(num_steps) * float(rescale_steps)
    half_dim = dim // 2
    emb = math.log(10000.0) / (half_dim - 1)
    emb = jnp.exp(jnp.arange(half_dim, dtype=jnp.float32) * -emb)
    emb = t[:, None] * emb[None, :]
    return jnp.concatenate([jnp.sin(emb), jnp.cos(emb)], axis=-1)  # (B, D)


def _timestep_modulation(timestep, w_pt, b_pt, *, diffusion_step, n_embd):
    """Returns (1 + scale), shift as (B, 1, D) f32 arrays.

    w_pt: (2D, D) PyTorch nn.Linear weight, b_pt: (2D,) bias.
    """
    e = sinusoidal_pos_emb(timestep, diffusion_step, n_embd)          # (B, D)
    e = e * jax.nn.sigmoid(e)                                         # SiLU
    proj = e @ w_pt.T.astype(jnp.float32) + b_pt.astype(jnp.float32)  # (B, 2D)
    scale = proj[:, :n_embd]
    shift = proj[:, n_embd:]
    scale1 = (1.0 + scale).reshape(-1, 1, n_embd)
    shift = shift.reshape(-1, 1, n_embd)
    return scale1, shift


# ---------------------------------------------------------------------------
# Pallas kernel: LayerNorm (no affine) + scale/shift modulation.
# ---------------------------------------------------------------------------
def _ada_ln_modulate_kernel(x_ref, scale1_ref, shift_ref, o_ref, *, eps, inv_d):
    # x_ref:      (TILE_T, Dp)  sequence tile of one batch element
    # scale1_ref: (1, Dp)       precomputed (1 + scale); zeros in pad columns
    # shift_ref:  (1, Dp)       precomputed shift; zeros in pad columns
    # o_ref:      (TILE_T, Dp)
    x = x_ref[...].astype(jnp.float32)

    # One-pass statistics over the lane dim.  Zero pad columns keep s1/s2
    # exact; inv_d is 1 / true_D.
    s1 = jnp.sum(x, axis=-1, keepdims=True)
    s2 = jnp.sum(x * x, axis=-1, keepdims=True)
    mean = s1 * inv_d
    var = jnp.maximum(s2 * inv_d - mean * mean, 0.0)
    ln = (x - mean) * jax.lax.rsqrt(var + eps)

    out = ln * scale1_ref[...].astype(jnp.float32) + shift_ref[...].astype(jnp.float32)
    o_ref[...] = out.astype(o_ref.dtype)


def _round_up(x, m):
    return ((x + m - 1) // m) * m


def _pick_tile_t(t, d_pad, itemsize, *, target_bytes, min_tiles):
    """Pick (tile_t, n_tiles) so tiles are ~target_bytes of input-dtype data,
    multiples of 8 rows (unless a single full-extent block), and padding waste
    is bounded by <8 rows per tile."""
    rows_target = max(8, ((target_bytes // max(d_pad * itemsize, 1)) // 8) * 8)
    n_tiles = max(pl.cdiv(t, rows_target), min_tiles)
    if n_tiles <= 1:
        return t, 1  # single block equal to the full sequence extent
    tile_t = _round_up(pl.cdiv(t, n_tiles), 8)
    n_tiles = pl.cdiv(t, tile_t)
    return tile_t, n_tiles


def ada_layer_norm(x, timestep, w_pt, b_pt, *, diffusion_step, eps=1e-5,
                   target_tile_bytes=2 << 20):
    """AdaLayerNorm forward.

    x:        (B, T, D) float32 or bfloat16
    timestep: (B,) int32
    w_pt:     (2D, D)  nn.Linear weight (PyTorch layout)
    b_pt:     (2D,)    nn.Linear bias
    """
    B, T, D = x.shape

    # Hoisted projection (tiny; one (B,D)@(D,2D) matmul in plain JAX).
    scale1, shift = _timestep_modulation(
        timestep, w_pt, b_pt, diffusion_step=diffusion_step, n_embd=D)

    # Lane-dense feature dim: zero-pad D to a multiple of 128.  Zero columns
    # keep the LayerNorm statistics exact (inv_d = 1/true_D) and zero
    # (1+scale)/shift pad columns make the padded output columns exactly 0.
    d_pad = _round_up(D, 128)
    if d_pad != D:
        x_in = jnp.pad(x, ((0, 0), (0, 0), (0, d_pad - D)))
        scale1 = jnp.pad(scale1, ((0, 0), (0, 0), (0, d_pad - D)))
        shift = jnp.pad(shift, ((0, 0), (0, 0), (0, d_pad - D)))
    else:
        x_in = x

    itemsize = jnp.dtype(x.dtype).itemsize
    # Guarantee >= 2 grid steps when B == 1 so both v7x TensorCores get work.
    min_tiles = 2 if (B == 1 and T >= 16) else 1
    tile_t, n_t_tiles = _pick_tile_t(
        T, d_pad, itemsize, target_bytes=target_tile_bytes, min_tiles=min_tiles)

    kernel = functools.partial(_ada_ln_modulate_kernel, eps=eps, inv_d=1.0 / float(D))

    cost = pl.CostEstimate(
        flops=8 * B * T * d_pad,
        transcendentals=B * T,
        bytes_accessed=2 * B * T * d_pad * itemsize,
    )

    out = pl.pallas_call(
        kernel,
        out_shape=jax.ShapeDtypeStruct((B, T, d_pad), x.dtype),
        # Ragged last sequence block: OOB input rows are garbage but only feed
        # their own (masked) output rows; no wrapper-level pad/slice of T.
        grid=(B, n_t_tiles),
        in_specs=[
            # Leading size-1 batch block dim squeezed -> kernel sees 2-D tiles.
            pl.BlockSpec((None, tile_t, d_pad), lambda b, t: (b, t, 0)),  # x
            pl.BlockSpec((None, 1, d_pad), lambda b, t: (b, 0, 0)),       # 1+scale
            pl.BlockSpec((None, 1, d_pad), lambda b, t: (b, 0, 0)),       # shift
        ],
        out_specs=pl.BlockSpec((None, tile_t, d_pad), lambda b, t: (b, t, 0)),
        compiler_params=pltpu.CompilerParams(
            dimension_semantics=("parallel", "parallel"),
            vmem_limit_bytes=32 << 20),
        cost_estimate=cost,
    )(x_in, scale1, shift)

    if d_pad != D:
        out = out[..., :D]
    return out


# ---------------------------------------------------------------------------
# Pure-JAX reference mirroring the PyTorch forward.
# ---------------------------------------------------------------------------
def _reference(x, timestep, w_pt, b_pt, *, diffusion_step, eps=1e-5):
    B, T, D = x.shape
    e = sinusoidal_pos_emb(timestep, diffusion_step, D)
    e = e * jax.nn.sigmoid(e)
    proj = e @ w_pt.T + b_pt                                  # (B, 2D)
    scale, shift = proj[:, None, :D], proj[:, None, D:]
    xf = x.astype(jnp.float32)
    mean = jnp.mean(xf, axis=-1, keepdims=True)
    var = jnp.mean(jnp.square(xf - mean), axis=-1, keepdims=True)
    ln = (xf - mean) / jnp.sqrt(var + eps)
    return (ln * (1.0 + scale) + shift).astype(x.dtype)


if __name__ == "__main__":
    DIFFUSION_STEPS = 100
    key = jax.random.PRNGKey(0)

    def make_case(key, B, T, D, dtype):
        kx, kw, kb, kt = jax.random.split(key, 4)
        x = jax.random.normal(kx, (B, T, D), dtype=jnp.float32).astype(dtype)
        timestep = jax.random.randint(kt, (B,), 0, DIFFUSION_STEPS, dtype=jnp.int32)
        bound = 1.0 / math.sqrt(D)
        w_pt = jax.random.uniform(kw, (2 * D, D), jnp.float32, -bound, bound)
        b_pt = jax.random.uniform(kb, (2 * D,), jnp.float32, -bound, bound)
        return x, timestep, w_pt, b_pt

    k1, k2, k3, k4 = jax.random.split(key, 4)

    # Case 1: small module-like shapes (B=2, T=8, D=32), f32.  Exercises the
    # lane-dense D padding path (32 -> 128).
    x, ts, w, b = make_case(k1, 2, 8, 32, jnp.float32)
    out = jax.block_until_ready(ada_layer_norm(x, ts, w, b, diffusion_step=DIFFUSION_STEPS))
    ref = _reference(x, ts, w, b, diffusion_step=DIFFUSION_STEPS)
    assert out.shape == x.shape
    assert jnp.allclose(out, ref, atol=1e-4, rtol=1e-4), "case1 mismatch"

    # Case 2: lane-aligned D (128), T=37 not a multiple of 8 -> single
    # full-extent sequence block (no padding anywhere).
    x, ts, w, b = make_case(k2, 2, 37, 128, jnp.float32)
    out = jax.block_until_ready(ada_layer_norm(x, ts, w, b, diffusion_step=DIFFUSION_STEPS))
    ref = _reference(x, ts, w, b, diffusion_step=DIFFUSION_STEPS)
    assert out.shape == x.shape
    assert jnp.allclose(out, ref, atol=1e-4, rtol=1e-4), "case2 mismatch"

    # Case 3: bf16 I/O, B=1 -> sequence axis split into >=2 tiles with a
    # ragged last block (megacore path); f32 math inside.
    x, ts, w, b = make_case(k3, 1, 100, 128, jnp.bfloat16)
    out = jax.block_until_ready(ada_layer_norm(x, ts, w, b, diffusion_step=DIFFUSION_STEPS))
    ref = _reference(x, ts, w, b, diffusion_step=DIFFUSION_STEPS)
    assert out.shape == x.shape and out.dtype == jnp.bfloat16
    assert jnp.allclose(out.astype(jnp.float32), ref.astype(jnp.float32),
                        atol=3e-2, rtol=3e-2), "case3 (bf16) mismatch"

    # Case 4: force tiny tiles (target ~4 KiB) so T=37 splits into 5 blocks
    # with a ragged 5-row last block — exercises masked partial stores.
    x, ts, w, b = make_case(k4, 2, 37, 128, jnp.float32)
    out = jax.block_until_ready(ada_layer_norm(
        x, ts, w, b, diffusion_step=DIFFUSION_STEPS, target_tile_bytes=8 * 128 * 4))
    ref = _reference(x, ts, w, b, diffusion_step=DIFFUSION_STEPS)
    assert out.shape == x.shape
    assert jnp.allclose(out, ref, atol=1e-4, rtol=1e-4), "case4 (ragged tiles) mismatch"

    print("KERNEL_OK")
</pallas_src>

<mosaic_0001>
module attributes {stable_mosaic.version = 11 : i64} {
  func.func @_ada_ln_modulate_kernel(%arg0: i32, %arg1: i32, %arg2: memref<1x8x128xf32, #tpu.memory_space<vmem>>, %arg3: memref<1x1x128xf32, #tpu.memory_space<vmem>>, %arg4: memref<1x1x128xf32, #tpu.memory_space<vmem>>, %arg5: memref<1x8x128xf32, #tpu.memory_space<vmem>>) attributes {dimension_semantics = [#tpu.dimension_semantics<parallel>, #tpu.dimension_semantics<parallel>], iteration_bounds = array<i64: 2, 1>, scalar_prefetch = 0 : i64, scratch_operands = 0 : i64, tpu.core_type = #tpu.core_type<tc>, window_params = [{transform_indices = @transform_0, window_bounds = array<i64: 1, 8, 128>}, {transform_indices = @transform_1, window_bounds = array<i64: 1, 1, 128>}, {transform_indices = @transform_2, window_bounds = array<i64: 1, 1, 128>}, {transform_indices = @transform_3, window_bounds = array<i64: 1, 8, 128>}]} {
    %c0 = arith.constant 0 : index
    %c0_0 = arith.constant 0 : index
    %c0_1 = arith.constant 0 : index
    %0 = vector.load %arg2[%c0, %c0_0, %c0_1] : memref<1x8x128xf32, #tpu.memory_space<vmem>>, vector<1x8x128xf32>
    %1 = vector.shape_cast %0 : vector<1x8x128xf32> to vector<8x128xf32>
    %cst = arith.constant dense<0.000000e+00> : vector<8xf32>
    %2 = vector.multi_reduction <add>, %1, %cst [1] : vector<8x128xf32> to vector<8xf32>
    %3 = vector.shape_cast %2 : vector<8xf32> to vector<8x1xf32>
    %4 = arith.mulf %1, %1 : vector<8x128xf32>
    %cst_2 = arith.constant dense<0.000000e+00> : vector<8xf32>
    %5 = vector.multi_reduction <add>, %4, %cst_2 [1] : vector<8x128xf32> to vector<8xf32>
    %6 = vector.shape_cast %5 : vector<8xf32> to vector<8x1xf32>
    %cst_3 = arith.constant 3.125000e-02 : f32
    %7 = vector.broadcast %cst_3 : f32 to vector<8x1xf32>
    %8 = arith.mulf %3, %7 : vector<8x1xf32>
    %cst_4 = arith.constant 3.125000e-02 : f32
    %9 = vector.broadcast %cst_4 : f32 to vector<8x1xf32>
    %10 = arith.mulf %6, %9 : vector<8x1xf32>
    %11 = arith.mulf %8, %8 : vector<8x1xf32>
    %12 = arith.subf %10, %11 : vector<8x1xf32>
    %cst_5 = arith.constant 0.000000e+00 : f32
    %13 = vector.broadcast %cst_5 : f32 to vector<8x1xf32>
    %14 = arith.maximumf %12, %13 : vector<8x1xf32>
    %15 = vector.broadcast %8 : vector<8x1xf32> to vector<8x128xf32>
    %16 = arith.subf %1, %15 : vector<8x128xf32>
    %cst_6 = arith.constant 9.99999974E-6 : f32
    %17 = vector.broadcast %cst_6 : f32 to vector<8x1xf32>
    %18 = arith.addf %14, %17 : vector<8x1xf32>
    %19 = math.rsqrt %18 : vector<8x1xf32>
    %20 = vector.broadcast %19 : vector<8x1xf32> to vector<8x128xf32>
    %21 = arith.mulf %16, %20 : vector<8x128xf32>
    %c0_7 = arith.constant 0 : index
    %c0_8 = arith.constant 0 : index
    %c0_9 = arith.constant 0 : index
    %22 = vector.load %arg3[%c0_7, %c0_8, %c0_9] : memref<1x1x128xf32, #tpu.memory_space<vmem>>, vector<1x1x128xf32>
    %23 = vector.shape_cast %22 : vector<1x1x128xf32> to vector<1x128xf32>
    %24 = vector.broadcast %23 : vector<1x128xf32> to vector<8x128xf32>
    %25 = arith.mulf %21, %24 : vector<8x128xf32>
    %c0_10 = arith.constant 0 : index
    %c0_11 = arith.constant 0 : index
    %c0_12 = arith.constant 0 : index
    %26 = vector.load %arg4[%c0_10, %c0_11, %c0_12] : memref<1x1x128xf32, #tpu.memory_space<vmem>>, vector<1x1x128xf32>
    %27 = vector.shape_cast %26 : vector<1x1x128xf32> to vector<1x128xf32>
    %28 = vector.broadcast %27 : vector<1x128xf32> to vector<8x128xf32>
    %29 = arith.addf %25, %28 : vector<8x128xf32>
    %c0_13 = arith.constant 0 : index
    %c0_14 = arith.constant 0 : index
    %c0_15 = arith.constant 0 : index
    %30 = vector.load %arg5[%c0_13, %c0_14, %c0_15] : memref<1x8x128xf32, #tpu.memory_space<vmem>>, vector<1x8x128xf32>
    %31 = vector.shape_cast %30 : vector<1x8x128xf32> to vector<8x128xf32>
    %32 = vector.shape_cast %29 : vector<8x128xf32> to vector<1x8x128xf32>
    tpu.vector_store %arg5[%c0_13, %c0_14, %c0_15], %32 {strides = array<i32>} : memref<1x8x128xf32, #tpu.memory_space<vmem>>, vector<1x8x128xf32>,
    return
  }
  func.func @transform_0(%arg0: i32, %arg1: i32) -> (i32, i32, i32) {
    %c0_i32 = arith.constant 0 : i32
    %c0_i32_0 = arith.constant 0 : i32
    return %arg0, %arg1, %c0_i32 : i32, i32, i32
  }
  func.func @transform_1(%arg0: i32, %arg1: i32) -> (i32, i32, i32) {
    %c0_i32 = arith.constant 0 : i32
    %c0_i32_0 = arith.constant 0 : i32
    %c0_i32_1 = arith.constant 0 : i32
    return %arg0, %c0_i32, %c0_i32_0 : i32, i32, i32
  }
  func.func @transform_2(%arg0: i32, %arg1: i32) -> (i32, i32, i32) {
    %c0_i32 = arith.constant 0 : i32
    %c0_i32_0 = arith.constant 0 : i32
    %c0_i32_1 = arith.constant 0 : i32
    return %arg0, %c0_i32, %c0_i32_0 : i32, i32, i32
  }
  func.func @transform_3(%arg0: i32, %arg1: i32) -> (i32, i32, i32) {
    %c0_i32 = arith.constant 0 : i32
    %c0_i32_0 = arith.constant 0 : i32
    return %arg0, %arg1, %c0_i32 : i32, i32, i32
  }
}

</mosaic_0001>

<llo_original>
// kernel: tpu_custom_call.1
$region0: #{tpu_custom_call.1}
  #allocation0 [shape = 'u32[]', space=smem, size = 0x4, offset = 0x4, fixed_abs, tag = 'smem constant byte address 0x4 - core index']
  #allocation1 [shape = 'u32[144,128]{1,0:T(1,128)}', space=vmem, size = 0x12000, scoped, tag = 'internal scratch']
  %s0 = inlined_call_operand.hbm [shape: f32[2,8,128], index: 0, kind: input, shape index: {}]
  %s1 = inlined_call_operand.vmem [shape: f32[2,1,128], index: 1, kind: input, shape index: {}]
  %s2 = inlined_call_operand.vmem [shape: f32[2,1,128], index: 2, kind: input, shape index: {}]
  %s3 = inlined_call_operand.hbm [shape: f32[2,8,128], index: 3, kind: output, shape index: {}]
  %s4 = sld [smem:[#allocation0]]
  $region49: #{tpu_custom_call.1} parent=0
    _
  %s6 = ssub.s32 1, %s4
  %s7 = scalar_select 0, %s6, %s4
  $region1: #{tpu_custom_call.1} parent=0
    #allocation2 [shape = 'u8[8192]{0}', space=vmem, size = 0x2000, scoped, tag = 'input window, operand 0']
    #allocation3 [shape = 's32[2]{0}', space=sflag, size = 0x8, scoped, tag = 'scoped memory for tpu_custom_call.1']
    #allocation4 [shape = 's32[2]{0}', space=sflag, size = 0x8, scoped, tag = 'scoped memory for tpu_custom_call.1']
    #allocation5 [shape = 'u8[8192]{0}', space=vmem, size = 0x2000, scoped, tag = 'output window, operand 0']
    %8 = vsyncpa [#allocation3], 0
    %s9 = scalar_lea.sflag [#allocation3], 1
    %10 = vsyncpa %s9, 0
    %11 = vsyncpa [#allocation4], 0
    %s12 = scalar_lea.sflag [#allocation4], 1
    %13 = vsyncpa %s12, 0
    loop: start=0, step=1, limit=4
    $region2: #{tpu_custom_call.1} parent=1 // loop_pre_header
      _
    $region3: #{tpu_custom_call.1} parent=1 // loop_header
      %s15 = sphi 0, %s19
      %p16 = scmp.ge.s32.totalorder %s15, 4
      %s22 = sphi 0, %s34
      %s23 = sphi 0, %s30
      %s24 = sphi 0, %s22
      %s25 = sphi 0, %s23
      %s26 = sphi 0, %s24
      %s27 = sphi 0, %s25
      %s39 = sphi 0, %s41
      %s42 = sphi 0, %s39
      %s43 = sphi 0, %s42
      %s59 = sphi 0, %s43
      %s65 = sphi 0, %s67
      %s68 = sphi 0, %s65
      %s69 = sphi 0, %s68
      %s85 = sphi 0, %s69
      %s91 = sphi 0, %s93
      %s94 = sphi 0, %s91
      %s95 = sphi 0, %s94
      %s111 = sphi 0, %s95
      %s119 = sphi 0, %s121
      %s122 = sphi 0, %s119
      %s123 = sphi 0, %s122
      %s139 = sphi 0, %s123
    $region4: #{tpu_custom_call.1} parent=1 // loop_header_branch
      %18 = sbr.rel (%p16) target = $region8
    $region5: #{tpu_custom_call.1} parent=1 // loop_body
      %s20 = ssub.s32 %s15, 1
      %s21 = ssub.s32 %s15, 2
      %s28 = sadd.s32 1, %s23
      %p29 = scmp.ge.s32.totalorder %s28, 1
      %s30 = scalar_select %p29, 0, %s28
      %s31 = sadd.s32 1, %s22
      %s32 = scalar_select %p29, %s31, %s22
      %p33 = scmp.ge.s32.totalorder %s32, 2
      %s34 = scalar_select %p33, 0, %s32
      %s35 = ssub.s32 %s22, %s34
      %s36 = ssub.s32 %s23, %s30
      %s37 = sor.u32 %s35, %s36
      %p38 = scmp.eq.s32.totalorder %s37, 0
      %s40 = sadd.s32 %s39, 1
      %s41 = scalar_select %p38, %s39, %s40
      %p44 = pneg %p38
      %p45 = scmp.eq.s32.totalorder %s15, 1
      %p46 = por %p44, %p45
      %p47 = scmp.ne.s32.totalorder %s39, %s42
      %p48 = scmp.eq.s32.totalorder %s15, 0
      %p49 = por %p47, %p48
      %p50 = scmp.ne.s32.totalorder %s39, %s42
      %p51 = scmp.eq.s32.totalorder %s20, 1
      %p52 = por %p50, %p51
      %p53 = scmp.ne.s32.totalorder %s42, %s43
      %p54 = scmp.eq.s32.totalorder %s20, 0
      %p55 = por %p53, %p54
      %p56 = scmp.ne.s32.totalorder %s42, %s43
      %p57 = scmp.eq.s32.totalorder %s21, 1
      %p58 = por %p56, %p57
      %p60 = scmp.ne.s32.totalorder %s43, %s59
      %p61 = scmp.eq.s32.totalorder %s21, 0
      %p62 = por %p60, %p61
      %s63 = ssub.s32 %s22, %s34
      %p64 = scmp.eq.s32.totalorder %s63, 0
      %s66 = sadd.s32 %s65, 1
      %s67 = scalar_select %p64, %s65, %s66
      %p70 = pneg %p64
      %p71 = scmp.eq.s32.totalorder %s15, 1
      %p72 = por %p70, %p71
      %p73 = scmp.ne.s32.totalorder %s65, %s68
      %p74 = scmp.eq.s32.totalorder %s15, 0
      %p75 = por %p73, %p74
      %p76 = scmp.ne.s32.totalorder %s65, %s68
      %p77 = scmp.eq.s32.totalorder %s20, 1
      %p78 = por %p76, %p77
      %p79 = scmp.ne.s32.totalorder %s68, %s69
      %p80 = scmp.eq.s32.totalorder %s20, 0
      %p81 = por %p79, %p80
      %p82 = scmp.ne.s32.totalorder %s68, %s69
      %p83 = scmp.eq.s32.totalorder %s21, 1
      %p84 = por %p82, %p83
      %p86 = scmp.ne.s32.totalorder %s69, %s85
      %p87 = scmp.eq.s32.totalorder %s21, 0
      %p88 = por %p86, %p87
      %s89 = ssub.s32 %s22, %s34
      %p90 = scmp.eq.s32.totalorder %s89, 0
      %s92 = sadd.s32 %s91, 1
      %s93 = scalar_select %p90, %s91, %s92
      %p96 = pneg %p90
      %p97 = scmp.eq.s32.totalorder %s15, 1
      %p98 = por %p96, %p97
      %p99 = scmp.ne.s32.totalorder %s91, %s94
      %p100 = scmp.eq.s32.totalorder %s15, 0
      %p101 = por %p99, %p100
      %p102 = scmp.ne.s32.totalorder %s91, %s94
      %p103 = scmp.eq.s32.totalorder %s20, 1
      %p104 = por %p102, %p103
      %p105 = scmp.ne.s32.totalorder %s94, %s95
      %p106 = scmp.eq.s32.totalorder %s20, 0
      %p107 = por %p105, %p106
      %p108 = scmp.ne.s32.totalorder %s94, %s95
      %p109 = scmp.eq.s32.totalorder %s21, 1
      %p110 = por %p108, %p109
      %p112 = scmp.ne.s32.totalorder %s95, %s111
      %p113 = scmp.eq.s32.totalorder %s21, 0
      %p114 = por %p112, %p113
      %s115 = ssub.s32 %s22, %s34
      %s116 = ssub.s32 %s23, %s30
      %s117 = sor.u32 %s115, %s116
      %p118 = scmp.eq.s32.totalorder %s117, 0
      %s120 = sadd.s32 %s119, 1
      %s121 = scalar_select %p118, %s119, %s120
      %p124 = pneg %p118
      %p125 = scmp.eq.s32.totalorder %s15, 1
      %p126 = por %p124, %p125
      %p127 = scmp.ne.s32.totalorder %s119, %s122
      %p128 = scmp.eq.s32.totalorder %s15, 0
      %p129 = por %p127, %p128
      %p130 = scmp.ne.s32.totalorder %s119, %s122
      %p131 = scmp.eq.s32.totalorder %s20, 1
      %p132 = por %p130, %p131
      %p133 = scmp.ne.s32.totalorder %s122, %s123
      %p134 = scmp.eq.s32.totalorder %s20, 0
      %p135 = por %p133, %p134
      %p136 = scmp.ne.s32.totalorder %s122, %s123
      %p137 = scmp.eq.s32.totalorder %s21, 1
      %p138 = por %p136, %p137
      %p140 = scmp.ne.s32.totalorder %s123, %s139
      %p141 = scmp.eq.s32.totalorder %s21, 0
      %p142 = por %p140, %p141
      %p143 = scmp.le.s32.totalorder 1, %s15
      %p144 = scmp.lt.s32.totalorder %s15, 3
      %p145 = pnand %p143, %p144
      %p146 = pneg %p145
      // Predicated region
      $region9: #{tpu_custom_call.1} parent=5 // pred_check
        _
      $region10: #{tpu_custom_call.1} parent=5 // pred_check_branch
        %148 = sbr.rel (%p145) target = $region12
      $region11: #{tpu_custom_call.1} parent=5 // pred_region
        %s149 = ssub.s32 %s15, 1
      $region12: #{tpu_custom_call.1} parent=5 // pred_fallthru
        _
      %p150 = scmp.lt.s32.totalorder %s15, 2
      // Predicated region
      $region13: #{tpu_custom_call.1} parent=5 // pred_check
        %p151 = pneg %p150
      $region14: #{tpu_custom_call.1} parent=5 // pred_check_branch
        %153 = sbr.rel (%p151) target = $region16
      $region15: #{tpu_custom_call.1} parent=5 // pred_region
        // Predicated region
        $region17: #{tpu_custom_call.1} parent=15 // pred_check
          %p154 = pneg %p49
        $region18: #{tpu_custom_call.1} parent=15 // pred_check_branch
          %156 = sbr.rel (%p154) target = $region20
        $region19: #{tpu_custom_call.1} parent=15 // pred_region
          %s157 = sand.u32 %s39, 1
          %s158 = scalar_lea.sflag [#allocation3], %s157
          %s159 = sand.u32 %s39, 1
          %s160 = smul.addr %s159, 8
          %s161 = scalar_lea.vmem [#allocation2], %s160
          %s163 = ssub.s32 128, 128
          %164 = vsyncadd %s158, %s163
          %s165 = sadd.s32 %s23, %s22
          %s166 = smul.addr %s165, 128
          %s167 = scalar_lea.hbm %s0, %s166
          %s169 = sshll.u32 %s161, 4
          %s170 = int_to_ptr.vmem [resolvable:$true] %s169
          %172 = dma.hbm_to_vmem [thread:$0]  %s167, 128, %s170, %s158
        $region20: #{tpu_custom_call.1} parent=15 // pred_fallthru
          _
        // Predicated region
        $region21: #{tpu_custom_call.1} parent=15 // pred_check
          %p173 = pneg %p75
        $region22: #{tpu_custom_call.1} parent=15 // pred_check_branch
          %175 = sbr.rel (%p173) target = $region24
        $region23: #{tpu_custom_call.1} parent=15 // pred_region
          %p176 = scmp.lt.s32.totalorder %s22, 1
          %s177 = scalar_select %p176, %s22, 1
          %s178 = scalar_lea.vmem %s1, %s177
        $region24: #{tpu_custom_call.1} parent=15 // pred_fallthru
          _
        // Predicated region
        $region25: #{tpu_custom_call.1} parent=15 // pred_check
          %p179 = pneg %p101
        $region26: #{tpu_custom_call.1} parent=15 // pred_check_branch
          %181 = sbr.rel (%p179) target = $region28
        $region27: #{tpu_custom_call.1} parent=15 // pred_region
          %p182 = scmp.lt.s32.totalorder %s22, 1
          %s183 = scalar_select %p182, %s22, 1
          %s184 = scalar_lea.vmem %s2, %s183
        $region28: #{tpu_custom_call.1} parent=15 // pred_fallthru
          _
      $region16: #{tpu_custom_call.1} parent=5 // pred_fallthru
        _
      %p185 = scmp.le.s32.totalorder 1, %s15
      %p186 = scmp.lt.s32.totalorder %s15, 3
      %p187 = pnand %p185, %p186
      %p188 = pneg %p187
      // Predicated region
      $region29: #{tpu_custom_call.1} parent=5 // pred_check
        _
      $region30: #{tpu_custom_call.1} parent=5 // pred_check_branch
        %190 = sbr.rel (%p187) target = $region32
      $region31: #{tpu_custom_call.1} parent=5 // pred_region
        %s191 = ssub.s32 %s15, 1
        %s192 = sand.u32 %s42, 1
        %s193 = scalar_lea.sflag [#allocation3], %s192
        %s194 = sand.u32 %s42, 1
        %s195 = smul.addr %s194, 8
        %s196 = scalar_lea.vmem [#allocation2], %s195
        // Predicated region
        $region33: #{tpu_custom_call.1} parent=31 // pred_check
          %p197 = pneg %p55
        $region34: #{tpu_custom_call.1} parent=31 // pred_check_branch
          %199 = sbr.rel (%p197) target = $region36
        $region35: #{tpu_custom_call.1} parent=31 // pred_region
          %200 = dma.done %s193, 128
        $region36: #{tpu_custom_call.1} parent=31 // pred_fallthru
          _
        %s201 = sand.u32 %s42, 1
        %s202 = scalar_lea.sflag [#allocation3], %s201
        %s203 = sand.u32 %s42, 1
        %s204 = smul.addr %s203, 8
        %s205 = scalar_lea.vmem [#allocation2], %s204
        %p206 = pneg %p55
        %p207 = pneg %p52
        %p208 = scmp.lt.s32.totalorder %s24, 1
        %s209 = scalar_select %p208, %s24, 1
        %s210 = scalar_lea.vmem %s1, %s209
        %p211 = pneg %p81
        %p212 = pneg %p78
        %p213 = scmp.lt.s32.totalorder %s24, 1
        %s214 = scalar_select %p213, %s24, 1
        %s215 = scalar_lea.vmem %s2, %s214
        %p216 = pneg %p107
        %p217 = pneg %p104
        %p218 = pneg %p135
        %p219 = pneg %p132
        %s220 = sand.u32 %s122, 1
        %s221 = scalar_lea.sflag [#allocation4], %s220
        %s222 = sand.u32 %s122, 1
        %s223 = smul.addr %s222, 8
        %s224 = scalar_lea.vmem [#allocation5], %s223
        %p225 = scmp.lt.s32.totalorder %s24, 1
        %s226 = scalar_select %p225, %s24, 1
        %s227 = scalar_lea.vmem %s1, %s226
        %p228 = scmp.lt.s32.totalorder %s24, 1
        %s229 = scalar_select %p228, %s24, 1
        %s230 = scalar_lea.vmem %s2, %s229
        %v231 = vld [vmem:[%s196] sm:$0xff]
        %232 = vadd.xlane.f32.xlu0 %v231
        %v233 = vpop.xlane.xlu0 %232
        %v234 = vmul.f32 %v231, %v231
        %235 = vadd.xlane.f32.xlu0 %v234
        %v236 = vpop.xlane.xlu0 %235
        %v237 = vmul.f32 %v233, 0.03125
        %v238 = vmul.f32 %v236, 0.03125
        %v239 = vmul.f32 %v237, %v237
        %v240 = vsub.f32 %v238, %v239
        %v241 = vmax.f32 %v240, 0.0
        %v242 = vsub.f32 %v231, %v237
        %v243 = vadd.f32 %v241, 1e-05
        %v244 = vrsqrt.pop %v243
        %v245 = vmul.f32 %v242, %v244
        %v246 = vld [vmem:[%s227] sm:$0x1]
        %v248 = vlaneseq
        %v249 = vshrl.u32 %v248, 7
        %v250 = vsub.s32 0, %v249
        %v251 = vrot.slane %v246, %v250
        %v253 = vmul.f32 %v245, %v251
        %v254 = vld [vmem:[%s230] sm:$0x1]
        %v256 = vlaneseq
        %v257 = vshrl.u32 %v256, 7
        %v258 = vsub.s32 0, %v257
        %v259 = vrot.slane %v254, %v258
        %v261 = vadd.f32 %v253, %v259
        %262 = vst [vmem:[%s224] sm:$0xff] %v261
        %s263 = sand.u32 %s122, 1
        %s264 = scalar_lea.sflag [#allocation4], %s263
        %s265 = sand.u32 %s122, 1
        %s266 = smul.addr %s265, 8
        %s267 = scalar_lea.vmem [#allocation5], %s266
        // Predicated region
        $region37: #{tpu_custom_call.1} parent=31 // pred_check
          %p268 = pneg %p132
        $region38: #{tpu_custom_call.1} parent=31 // pred_check_branch
          %270 = sbr.rel (%p268) target = $region40
        $region39: #{tpu_custom_call.1} parent=31 // pred_region
          %s272 = ssub.s32 128, 128
          %273 = vsyncadd %s264, %s272
          %s274 = sadd.s32 %s25, %s24
          %s275 = smul.addr %s274, 128
          %s276 = scalar_lea.hbm %s3, %s275
          %s278 = sshll.u32 %s267, 4
          %s279 = int_to_ptr.vmem [resolvable:$true] %s278
          %281 = dma.vmem_to_hbm [thread:$0]  %s279, 128, %s276, %s264
        $region40: #{tpu_custom_call.1} parent=31 // pred_fallthru
          _
      $region32: #{tpu_custom_call.1} parent=5 // pred_fallthru
        _
      %p282 = scmp.le.s32.totalorder 2, %s15
      // Predicated region
      $region41: #{tpu_custom_call.1} parent=5 // pred_check
        %p283 = pneg %p282
      $region42: #{tpu_custom_call.1} parent=5 // pred_check_branch
        %285 = sbr.rel (%p283) target = $region44
      $region43: #{tpu_custom_call.1} parent=5 // pred_region
        %s286 = ssub.s32 %s15, 2
        // Predicated region
        $region45: #{tpu_custom_call.1} parent=43 // pred_check
          %p287 = pneg %p138
        $region46: #{tpu_custom_call.1} parent=43 // pred_check_branch
          %289 = sbr.rel (%p287) target = $region48
        $region47: #{tpu_custom_call.1} parent=43 // pred_region
          %s290 = sand.u32 %s123, 1
          %s291 = scalar_lea.sflag [#allocation4], %s290
          %s292 = sand.u32 %s123, 1
          %s293 = smul.addr %s292, 8
          %s294 = scalar_lea.vmem [#allocation5], %s293
          %295 = dma.done %s291, 128
        $region48: #{tpu_custom_call.1} parent=43 // pred_fallthru
          _
      $region44: #{tpu_custom_call.1} parent=5 // pred_fallthru
        _
    $region6: #{tpu_custom_call.1} parent=1 // loop_footer
      %s19 = sadd.s32 1, %s15
    $region7: #{tpu_custom_call.1} parent=1 // loop_footer_branch
      %14 = sbr.rel target = $region3
    $region8: #{tpu_custom_call.1} parent=1 // loop_exit
      _
    %296 = vsyncpa [#allocation3], 1
    %s297 = scalar_lea.sflag [#allocation3], 1
    %298 = vsyncpa %s297, 1
    %299 = vsyncpa [#allocation4], 1
    %s300 = scalar_lea.sflag [#allocation4], 1
    %301 = vsyncpa %s300, 1

</llo_original>
